<compile_context>
chip_gen: v5e
topology: v5e:2x2
jax: 0.10.0
libtpu: 0.0.40
codegen_flags: <defaults>
</compile_context>

<pallas_src>
import functools

import jax
import jax.numpy as jnp
import numpy as np
from jax import lax
from jax.experimental import pallas as pl
from jax.experimental.pallas import tpu as pltpu

EPS = 1e-12  # torch F.normalize eps (clamp-min on the norm)


def _round_up(x, m):
    return ((x + m - 1) // m) * m


def _vmem_capacity_bytes():
    try:
        return int(pltpu.get_tpu_info().vmem_capacity_bytes)
    except Exception:
        return 64 << 20  # conservative default: v7x per-TensorCore VMEM


def _plan(m, n, d, logits_dtype):
    """Pick tm / grid split / a VMEM limit that accounts for every resident."""
    cap = _vmem_capacity_bytes()
    r8 = lambda v: _round_up(max(v, 1), 8)
    r16 = lambda v: _round_up(max(v, 1), 16)
    r128 = lambda v: _round_up(max(v, 1), 128)
    lbytes = jnp.dtype(logits_dtype).itemsize

    # Residents independent of tm.
    fixed = (2 * r8(n) * r128(d) * 4      # (1, N, D) f32 `out`, double-buffered
             + r16(d) * r128(n) * 2       # (D, N) bf16 normalized-out scratch
             + 2 * 8 * 128 * 4)           # (1, 1, 2) f32 acc block (padded)
    # Per-M-row residents (out_mask + labels inputs, logits output), x2 buffers.
    per_row = 2 * (r128(d) * 4 + 128 * 4 + r128(n) * lbytes)

    budget = min(cap - (8 << 20), int(cap * 0.80))
    tm_cap = 2048 if cap >= (96 << 20) else 512   # bigger tiles on 128-MiB parts
    avail = budget - fixed
    if avail <= 16 * per_row:
        # TODO(synk): N*D too large to keep (1, N, D) + (D, N) resident; this
        # needs a flash-style online softmax over N tiles instead.
        tm = 16
    else:
        tm = min(tm_cap, (avail // per_row) // 16 * 16)
    if m <= tm:
        tm = m                              # full-dim block: any size is legal
    num_mt = -(-m // tm)
    # Split the M-tile axis into two "parallel" halves so v7x keeps both
    # TensorCores busy even when B == 1 (harmless on single-core chips).
    n_par = 2 if (num_mt >= 2 and num_mt % 2 == 0) else 1
    mt_inner = num_mt // n_par

    need = fixed + r16(tm) * per_row
    vmem_limit = int(min(max(int(need * 1.25) + (4 << 20), 32 << 20),
                         cap - (4 << 20)))
    return tm, n_par, mt_inner, vmem_limit


def _ntxent_kernel(out_ref, mask_ref, lbl_ref, logits_ref, acc_ref, xn_ref, *,
                   inv_t, tm, mt_inner, m_total):
    p = pl.program_id(1)   # parallel split of the M tiles
    i = pl.program_id(2)   # M tile within the split (arbitrary / sequential)

    # First M tile of this (batch, split): reset the accumulator and build the
    # normalized, 1/T-scaled, transposed `out` once; reused across all M tiles.
    @pl.when(i == 0)
    def _():
        acc_ref[...] = jnp.zeros_like(acc_ref)
        x = out_ref[0].astype(jnp.float32)                        # (N, D)
        # x / max(||x||, eps) == x * rsqrt(max(||x||^2, eps^2))    (EUP rsqrt)
        inv_n = lax.rsqrt(jnp.maximum(
            jnp.sum(x * x, axis=-1, keepdims=True), EPS * EPS))   # (N, 1)
        xn_ref[...] = (x * (inv_n * inv_t)).T.astype(jnp.bfloat16)  # (D, N)

    y = mask_ref[0].astype(jnp.float32)                           # (tm, D)
    inv_m = lax.rsqrt(jnp.maximum(
        jnp.sum(y * y, axis=-1, keepdims=True), EPS * EPS))
    yn = (y * inv_m).astype(jnp.bfloat16)

    # logits[m, n] = <out_mask_n[m], out_n[n]> / T   (bf16 MXU, f32 accumulate)
    logits = lax.dot_general(
        yn, xn_ref[...], (((1,), (0,)), ((), ())),
        preferred_element_type=jnp.float32)                       # (tm, N) f32
    logits_ref[0] = logits.astype(logits_ref.dtype)               # bf16 writeback

    # log-softmax statistics over N (no full (tm, N) logp materialization).
    row_max = jnp.max(logits, axis=-1, keepdims=True)
    lse = row_max + jnp.log(
        jnp.sum(jnp.exp(logits - row_max), axis=-1, keepdims=True))

    # NLLLoss(ignore_index=-1): gather the label logit via a one-hot reduce.
    lbl = lbl_ref[0]                                              # (tm, 1) i32
    n = logits.shape[-1]
    cls = lax.broadcasted_iota(jnp.int32, (tm, n), 1)
    picked = jnp.sum(jnp.where(cls == lbl, logits, 0.0),
                     axis=-1, keepdims=True)                      # (tm, 1)

    valid = lbl >= 0
    if m_total % tm != 0:  # static: mask rows past M in the ragged last block
        row = (p * mt_inner + i) * tm + lax.broadcasted_iota(
            jnp.int32, (tm, 1), 0)
        valid = valid & (row < m_total)

    loss_sum = jnp.sum(jnp.where(valid, lse - picked, 0.0))
    cnt_sum = jnp.sum(jnp.where(valid, 1.0, 0.0))
    sel = lax.broadcasted_iota(jnp.int32, (1, 1, 2), 2)
    acc_ref[...] += jnp.where(sel == 0, loss_sum, cnt_sum)        # [sum, count]


def ntxent_loss_atom(out, out_mask, labels, t=0.1, logits_dtype=jnp.bfloat16):
    B, N, D = out.shape
    _, M, _ = out_mask.shape

    tm, n_par, mt_inner, vmem_limit = _plan(M, N, D, logits_dtype)

    # Labels as a (B, M, 1) i32 block; lane padding is tiny (<=4*tm bytes raw).
    lbl3 = labels.astype(jnp.int32).reshape(B, M, 1)

    kernel = functools.partial(_ntxent_kernel, inv_t=float(1.0 / t), tm=tm,
                               mt_inner=mt_inner, m_total=M)

    # TODO(synk): sweep pipeline depth (pl.Buffered(1) on the revisited `out`
    # input block / pl.Buffered(3) on the logits output) once pipeline_mode is
    # verified on the target Mosaic build; not used here to keep lowering safe.
    # TODO(synk): optionally feed out/out_mask as bf16 (or fuse a normalize
    # prologue kernel) to halve input HBM reads / VMEM residency on v7x.
    logits, acc = pl.pallas_call(
        kernel,
        out_shape=(
            jax.ShapeDtypeStruct((B, M, N), logits_dtype),
            jax.ShapeDtypeStruct((B * n_par, 1, 2), jnp.float32),
        ),
        grid_spec=pltpu.PrefetchScalarGridSpec(
            num_scalar_prefetch=0,
            grid=(B, n_par, mt_inner),
            in_specs=[
                pl.BlockSpec((1, N, D), lambda b, p, i: (b, 0, 0)),
                pl.BlockSpec((1, tm, D),
                             lambda b, p, i: (b, p * mt_inner + i, 0)),
                pl.BlockSpec((1, tm, 1),
                             lambda b, p, i: (b, p * mt_inner + i, 0)),
            ],
            out_specs=[
                pl.BlockSpec((1, tm, N),
                             lambda b, p, i: (b, p * mt_inner + i, 0)),
                pl.BlockSpec((1, 1, 2),
                             lambda b, p, i: (b * n_par + p, 0, 0)),
            ],
            scratch_shapes=[pltpu.VMEM((D, N), jnp.bfloat16)],
        ),
        compiler_params=pltpu.CompilerParams(
            dimension_semantics=("parallel", "parallel", "arbitrary"),
            vmem_limit_bytes=vmem_limit,
        ),
    )(out, out_mask, lbl3)

    # NLLLoss mean over non-ignored entries (NaN if every label is -1, matching
    # torch mean-over-empty behavior).
    loss = jnp.sum(acc[:, 0, 0]) / jnp.sum(acc[:, 0, 1])
    return loss, logits


def _reference(out, out_mask, labels, t=0.1):
    outn = out / jnp.maximum(jnp.linalg.norm(out, axis=-1, keepdims=True), EPS)
    maskn = out_mask / jnp.maximum(
        jnp.linalg.norm(out_mask, axis=-1, keepdims=True), EPS)
    logits = jnp.einsum('bmd,bnd->bmn', maskn, outn) / t
    logp = jax.nn.log_softmax(logits, axis=-1)
    valid = labels >= 0
    safe = jnp.where(valid, labels, 0)
    picked = jnp.take_along_axis(logp, safe[..., None], axis=-1)[..., 0]
    loss = jnp.sum(jnp.where(valid, -picked, 0.0)) / jnp.sum(valid)
    return loss, logits


if __name__ == "__main__":
    B, N, M, D = 2, 8, 8, 32
    key = jax.random.PRNGKey(0)
    k1, k2, k3 = jax.random.split(key, 3)

    out = jax.random.normal(k1, (B, N, D), dtype=jnp.float32)
    out_mask = jax.random.normal(k2, (B, M, D), dtype=jnp.float32)
    labels = jax.random.randint(k3, (B, M), 0, N, dtype=jnp.int32)
    labels = labels.at[0, 0].set(-1)   # exercise ignore_index=-1

    loss, logits = jax.block_until_ready(ntxent_loss_atom(out, out_mask, labels))

    ref_loss, ref_logits = _reference(out, out_mask, labels)
    # bf16 MXU matmul + bf16 logits output vs a pure-f32 reference: tolerances
    # relaxed accordingly (unit-normalized inputs, |logit| <= 1/T = 10).
    np.testing.assert_allclose(np.asarray(logits.astype(jnp.float32)),
                               np.asarray(ref_logits), rtol=2e-2, atol=1e-1)
    np.testing.assert_allclose(np.asarray(loss), np.asarray(ref_loss),
                               rtol=2e-2, atol=5e-2)

    print("KERNEL_OK")
</pallas_src>

<mosaic_0001>
module attributes {stable_mosaic.version = 11 : i64} {
  func.func @_ntxent_kernel(%arg0: i32, %arg1: i32, %arg2: i32, %arg3: memref<1x8x32xf32, #tpu.memory_space<vmem>>, %arg4: memref<1x8x32xf32, #tpu.memory_space<vmem>>, %arg5: memref<1x8x1xi32, #tpu.memory_space<vmem>>, %arg6: memref<1x8x8xbf16, #tpu.memory_space<vmem>>, %arg7: memref<1x1x2xf32, #tpu.memory_space<vmem>>, %arg8: memref<32x8xbf16, #tpu.memory_space<vmem>>) attributes {dimension_semantics = [#tpu.dimension_semantics<parallel>, #tpu.dimension_semantics<parallel>, #tpu.dimension_semantics<arbitrary>], iteration_bounds = array<i64: 2, 1, 1>, scalar_prefetch = 0 : i64, scratch_operands = 1 : i64, tpu.core_type = #tpu.core_type<tc>, window_params = [{transform_indices = @transform_0, window_bounds = array<i64: 1, 8, 32>}, {transform_indices = @transform_1, window_bounds = array<i64: 1, 8, 32>}, {transform_indices = @transform_2, window_bounds = array<i64: 1, 8, 1>}, {transform_indices = @transform_3, window_bounds = array<i64: 1, 8, 8>}, {transform_indices = @transform_4, window_bounds = array<i64: 1, 1, 2>}]} {
    %c0_i32 = arith.constant 0 : i32
    %0 = arith.cmpi eq, %arg2, %c0_i32 : i32
    %1 = arith.extui %0 : i1 to i32
    %c0_i32_0 = arith.constant 0 : i32
    %2 = arith.cmpi ne, %1, %c0_i32_0 : i32
    scf.if %2 {
      %cst_30 = arith.constant 0.000000e+00 : f32
      %63 = vector.broadcast %cst_30 : f32 to vector<1x1x2xf32>
      %c0_31 = arith.constant 0 : index
      %c0_32 = arith.constant 0 : index
      %c0_33 = arith.constant 0 : index
      %64 = vector.load %arg7[%c0_31, %c0_32, %c0_33] : memref<1x1x2xf32, #tpu.memory_space<vmem>>, vector<1x1x2xf32>
      tpu.vector_store %arg7[%c0_31, %c0_32, %c0_33], %63 {strides = array<i32>} : memref<1x1x2xf32, #tpu.memory_space<vmem>>, vector<1x1x2xf32>,
      %c0_34 = arith.constant 0 : index
      %c0_35 = arith.constant 0 : index
      %c0_36 = arith.constant 0 : index
      %65 = vector.load %arg3[%c0_34, %c0_35, %c0_36] : memref<1x8x32xf32, #tpu.memory_space<vmem>>, vector<1x8x32xf32>
      %66 = vector.shape_cast %65 : vector<1x8x32xf32> to vector<8x32xf32>
      %67 = arith.mulf %66, %66 : vector<8x32xf32>
      %cst_37 = arith.constant dense<0.000000e+00> : vector<8xf32>
      %68 = vector.multi_reduction <add>, %67, %cst_37 [1] : vector<8x32xf32> to vector<8xf32>
      %69 = vector.shape_cast %68 : vector<8xf32> to vector<8x1xf32>
      %cst_38 = arith.constant 1.000000e-24 : f32
      %70 = vector.broadcast %cst_38 : f32 to vector<8x1xf32>
      %71 = arith.maximumf %69, %70 : vector<8x1xf32>
      %72 = math.rsqrt %71 : vector<8x1xf32>
      %cst_39 = arith.constant 1.000000e+01 : f32
      %73 = vector.broadcast %cst_39 : f32 to vector<8x1xf32>
      %74 = arith.mulf %72, %73 : vector<8x1xf32>
      %75 = vector.broadcast %74 : vector<8x1xf32> to vector<8x32xf32>
      %76 = arith.mulf %66, %75 : vector<8x32xf32>
      %77 = tpu.transpose %76, [1, 0] : vector<8x32xf32> -> vector<32x8xf32>
      %78 = arith.truncf %77 : vector<32x8xf32> to vector<32x8xbf16>
      %c0_40 = arith.constant 0 : index
      %c0_41 = arith.constant 0 : index
      %79 = vector.load %arg8[%c0_40, %c0_41] : memref<32x8xbf16, #tpu.memory_space<vmem>>, vector<32x8xbf16>
      tpu.vector_store %arg8[%c0_40, %c0_41], %78 {strides = array<i32>} : memref<32x8xbf16, #tpu.memory_space<vmem>>, vector<32x8xbf16>,
    } else {
    }
    %c0 = arith.constant 0 : index
    %c0_1 = arith.constant 0 : index
    %c0_2 = arith.constant 0 : index
    %3 = vector.load %arg4[%c0, %c0_1, %c0_2] : memref<1x8x32xf32, #tpu.memory_space<vmem>>, vector<1x8x32xf32>
    %4 = vector.shape_cast %3 : vector<1x8x32xf32> to vector<8x32xf32>
    %5 = arith.mulf %4, %4 : vector<8x32xf32>
    %cst = arith.constant dense<0.000000e+00> : vector<8xf32>
    %6 = vector.multi_reduction <add>, %5, %cst [1] : vector<8x32xf32> to vector<8xf32>
    %7 = vector.shape_cast %6 : vector<8xf32> to vector<8x1xf32>
    %cst_3 = arith.constant 1.000000e-24 : f32
    %8 = vector.broadcast %cst_3 : f32 to vector<8x1xf32>
    %9 = arith.maximumf %7, %8 : vector<8x1xf32>
    %10 = math.rsqrt %9 : vector<8x1xf32>
    %11 = vector.broadcast %10 : vector<8x1xf32> to vector<8x32xf32>
    %12 = arith.mulf %4, %11 : vector<8x32xf32>
    %13 = arith.truncf %12 : vector<8x32xf32> to vector<8x32xbf16>
    %c0_4 = arith.constant 0 : index
    %c0_5 = arith.constant 0 : index
    %14 = vector.load %arg8[%c0_4, %c0_5] : memref<32x8xbf16, #tpu.memory_space<vmem>>, vector<32x8xbf16>
    %cst_6 = arith.constant dense<0.000000e+00> : vector<8x8xf32>
    %15 = tpu.matmul %13, %14, %cst_6 {dimension_numbers = #tpu.dot_dimension_numbers<[1], [0], [0], [1], [0, 0, 1, 1], [], []>} : vector<8x32xbf16>, vector<32x8xbf16>, vector<8x8xf32> -> vector<8x8xf32>
    %16 = arith.truncf %15 : vector<8x8xf32> to vector<8x8xbf16>
    %c0_7 = arith.constant 0 : index
    %c0_8 = arith.constant 0 : index
    %c0_9 = arith.constant 0 : index
    %17 = vector.load %arg6[%c0_7, %c0_8, %c0_9] : memref<1x8x8xbf16, #tpu.memory_space<vmem>>, vector<1x8x8xbf16>
    %18 = vector.shape_cast %17 : vector<1x8x8xbf16> to vector<8x8xbf16>
    %19 = vector.shape_cast %16 : vector<8x8xbf16> to vector<1x8x8xbf16>
    tpu.vector_store %arg6[%c0_7, %c0_8, %c0_9], %19 {strides = array<i32>} : memref<1x8x8xbf16, #tpu.memory_space<vmem>>, vector<1x8x8xbf16>,
    %cst_10 = arith.constant dense<0xFF800000> : vector<8xf32>
    %20 = vector.multi_reduction <maximumf>, %15, %cst_10 [1] : vector<8x8xf32> to vector<8xf32>
    %21 = vector.shape_cast %20 : vector<8xf32> to vector<8x1xf32>
    %22 = vector.broadcast %21 : vector<8x1xf32> to vector<8x8xf32>
    %23 = arith.subf %15, %22 : vector<8x8xf32>
    %24 = math.exp %23 : vector<8x8xf32>
    %cst_11 = arith.constant dense<0.000000e+00> : vector<8xf32>
    %25 = vector.multi_reduction <add>, %24, %cst_11 [1] : vector<8x8xf32> to vector<8xf32>
    %26 = vector.shape_cast %25 : vector<8xf32> to vector<8x1xf32>
    %27 = math.log %26 : vector<8x1xf32>
    %28 = arith.addf %21, %27 : vector<8x1xf32>
    %c0_12 = arith.constant 0 : index
    %c0_13 = arith.constant 0 : index
    %c0_14 = arith.constant 0 : index
    %29 = vector.load %arg5[%c0_12, %c0_13, %c0_14] : memref<1x8x1xi32, #tpu.memory_space<vmem>>, vector<1x8x1xi32>
    %30 = vector.shape_cast %29 : vector<1x8x1xi32> to vector<8x1xi32>
    %31 = tpu.iota {dimensions = array<i32: 1>} : vector<8x8xi32>
    %32 = vector.broadcast %30 : vector<8x1xi32> to vector<8x8xi32>
    %33 = arith.cmpi eq, %31, %32 : vector<8x8xi32>
    %cst_15 = arith.constant 0.000000e+00 : f32
    %34 = vector.broadcast %cst_15 : f32 to vector<8x8xf32>
    %35 = arith.select %33, %15, %34 : vector<8x8xi1>, vector<8x8xf32>
    %cst_16 = arith.constant dense<0.000000e+00> : vector<8xf32>
    %36 = vector.multi_reduction <add>, %35, %cst_16 [1] : vector<8x8xf32> to vector<8xf32>
    %37 = vector.shape_cast %36 : vector<8xf32> to vector<8x1xf32>
    %c0_i32_17 = arith.constant 0 : i32
    %38 = vector.broadcast %c0_i32_17 : i32 to vector<8x1xi32>
    %39 = arith.cmpi sge, %30, %38 : vector<8x1xi32>
    %40 = arith.subf %28, %37 : vector<8x1xf32>
    %cst_18 = arith.constant 0.000000e+00 : f32
    %41 = vector.broadcast %cst_18 : f32 to vector<8x1xf32>
    %42 = arith.select %39, %40, %41 : vector<8x1xi1>, vector<8x1xf32>
    %43 = vector.shape_cast %42 : vector<8x1xf32> to vector<1x8x1xf32>
    %cst_19 = arith.constant dense<0.000000e+00> : vector<1xf32>
    %44 = vector.multi_reduction <add>, %43, %cst_19 [1, 2] : vector<1x8x1xf32> to vector<1xf32>
    %45 = vector.shape_cast %44 : vector<1xf32> to vector<1x1x1xf32>
    %46 = vector.extract %45[0, 0, 0] : f32 from vector<1x1x1xf32>
    %cst_20 = arith.constant 1.000000e+00 : f32
    %cst_21 = arith.constant 0.000000e+00 : f32
    %47 = vector.broadcast %cst_20 : f32 to vector<8x1xf32>
    %48 = vector.broadcast %cst_21 : f32 to vector<8x1xf32>
    %49 = arith.select %39, %47, %48 : vector<8x1xi1>, vector<8x1xf32>
    %50 = vector.shape_cast %49 : vector<8x1xf32> to vector<1x8x1xf32>
    %cst_22 = arith.constant dense<0.000000e+00> : vector<1xf32>
    %51 = vector.multi_reduction <add>, %50, %cst_22 [1, 2] : vector<1x8x1xf32> to vector<1xf32>
    %52 = vector.shape_cast %51 : vector<1xf32> to vector<1x1x1xf32>
    %53 = vector.extract %52[0, 0, 0] : f32 from vector<1x1x1xf32>
    %54 = tpu.iota {dimensions = array<i32: 2>} : vector<1x1x2xi32>
    %c0_23 = arith.constant 0 : index
    %c0_24 = arith.constant 0 : index
    %c0_25 = arith.constant 0 : index
    %55 = vector.load %arg7[%c0_23, %c0_24, %c0_25] : memref<1x1x2xf32, #tpu.memory_space<vmem>>, vector<1x1x2xf32>
    %c0_i32_26 = arith.constant 0 : i32
    %56 = vector.broadcast %c0_i32_26 : i32 to vector<1x1x2xi32>
    %57 = arith.cmpi eq, %54, %56 : vector<1x1x2xi32>
    %58 = vector.broadcast %46 : f32 to vector<1x1x2xf32>
    %59 = vector.broadcast %53 : f32 to vector<1x1x2xf32>
    %60 = arith.select %57, %58, %59 : vector<1x1x2xi1>, vector<1x1x2xf32>
    %61 = arith.addf %55, %60 : vector<1x1x2xf32>
    %c0_27 = arith.constant 0 : index
    %c0_28 = arith.constant 0 : index
    %c0_29 = arith.constant 0 : index
    %62 = vector.load %arg7[%c0_27, %c0_28, %c0_29] : memref<1x1x2xf32, #tpu.memory_space<vmem>>, vector<1x1x2xf32>
    tpu.vector_store %arg7[%c0_27, %c0_28, %c0_29], %61 {strides = array<i32>} : memref<1x1x2xf32, #tpu.memory_space<vmem>>, vector<1x1x2xf32>,
    return
  }
  func.func @transform_0(%arg0: i32, %arg1: i32, %arg2: i32) -> (i32, i32, i32) {
    %c0_i32 = arith.constant 0 : i32
    %c0_i32_0 = arith.constant 0 : i32
    %c0_i32_1 = arith.constant 0 : i32
    return %arg0, %c0_i32, %c0_i32_0 : i32, i32, i32
  }
  func.func @transform_1(%arg0: i32, %arg1: i32, %arg2: i32) -> (i32, i32, i32) {
    %c1_i32 = arith.constant 1 : i32
    %0 = arith.muli %arg1, %c1_i32 : i32
    %1 = arith.addi %0, %arg2 : i32
    %c0_i32 = arith.constant 0 : i32
    %c0_i32_0 = arith.constant 0 : i32
    return %arg0, %1, %c0_i32 : i32, i32, i32
  }
  func.func @transform_2(%arg0: i32, %arg1: i32, %arg2: i32) -> (i32, i32, i32) {
    %c1_i32 = arith.constant 1 : i32
    %0 = arith.muli %arg1, %c1_i32 : i32
    %1 = arith.addi %0, %arg2 : i32
    %c0_i32 = arith.constant 0 : i32
    %c0_i32_0 = arith.constant 0 : i32
    return %arg0, %1, %c0_i32 : i32, i32, i32
  }
  func.func @transform_3(%arg0: i32, %arg1: i32, %arg2: i32) -> (i32, i32, i32) {
    %c1_i32 = arith.constant 1 : i32
    %0 = arith.muli %arg1, %c1_i32 : i32
    %1 = arith.addi %0, %arg2 : i32
    %c0_i32 = arith.constant 0 : i32
    %c0_i32_0 = arith.constant 0 : i32
    return %arg0, %1, %c0_i32 : i32, i32, i32
  }
  func.func @transform_4(%arg0: i32, %arg1: i32, %arg2: i32) -> (i32, i32, i32) {
    %c1_i32 = arith.constant 1 : i32
    %0 = arith.muli %arg0, %c1_i32 : i32
    %1 = arith.addi %0, %arg1 : i32
    %c0_i32 = arith.constant 0 : i32
    %c0_i32_0 = arith.constant 0 : i32
    %c0_i32_1 = arith.constant 0 : i32
    return %1, %c0_i32, %c0_i32_0 : i32, i32, i32
  }
}

</mosaic_0001>

<llo_original>
// kernel: tpu_custom_call.1
$region0: #{tpu_custom_call.1}
  #allocation0 [shape = 'u32[]', space=smem, size = 0x4, offset = 0x4, fixed_abs, tag = 'smem constant byte address 0x4 - core index']
  #allocation1 [shape = 'u32[72,128]{1,0:T(1,128)}', space=vmem, size = 0x9000, scoped, tag = 'internal scratch']
  #allocation2 [shape = 'bf16[32,8]{1,0:T(8,128)(2,1)}', space=vmem, size = 0x2000, scoped, tag = 'scratch operand']
  %s0 = inlined_call_operand.vmem [shape: f32[2,8,32], index: 0, kind: input, shape index: {}]
  %s1 = inlined_call_operand.hbm [shape: f32[2,8,32], index: 1, kind: input, shape index: {}]
  %s2 = inlined_call_operand.vmem [shape: s32[2,8,1], index: 2, kind: input, shape index: {}]
  %s3 = inlined_call_operand.hbm [shape: bf16[2,8,8], index: 3, kind: output, shape index: {0}]
  %s4 = inlined_call_operand.hbm [shape: f32[2,1,2], index: 4, kind: output, shape index: {1}]
  %5 = xla_tuple %s3, %s4
  %s6 = sld [smem:[#allocation0]]
  $region61: #{tpu_custom_call.1} parent=0
    _
  %s8 = ssub.s32 1, %s6
  %s9 = scalar_select 0, %s8, %s6
  $region1: #{tpu_custom_call.1} parent=0
    #allocation3 [shape = 'u8[8192]{0}', space=vmem, size = 0x2000, scoped, tag = 'input window, operand 1']
    #allocation4 [shape = 's32[2]{0}', space=sflag, size = 0x8, scoped, tag = 'scoped memory for tpu_custom_call.1']
    #allocation5 [shape = 's32[2]{0}', space=sflag, size = 0x8, scoped, tag = 'scoped memory for tpu_custom_call.1']
    #allocation6 [shape = 'u8[4096]{0}', space=vmem, size = 0x1000, scoped, tag = 'output window, operand 0']
    #allocation7 [shape = 'u8[1024]{0}', space=vmem, size = 0x400, scoped, tag = 'output window, operand 1']
    #allocation8 [shape = 's32[2]{0}', space=sflag, size = 0x8, scoped, tag = 'scoped memory for tpu_custom_call.1']
    %10 = vsyncpa [#allocation4], 0
    %s11 = scalar_lea.sflag [#allocation4], 1
    %12 = vsyncpa %s11, 0
    %13 = vsyncpa [#allocation5], 0
    %s14 = scalar_lea.sflag [#allocation5], 1
    %15 = vsyncpa %s14, 0
    %16 = vsyncpa [#allocation8], 0
    %s17 = scalar_lea.sflag [#allocation8], 1
    %18 = vsyncpa %s17, 0
    loop: start=0, step=1, limit=4
    $region2: #{tpu_custom_call.1} parent=1 // loop_pre_header
      _
    $region3: #{tpu_custom_call.1} parent=1 // loop_header
      %s20 = sphi 0, %s24
      %p21 = scmp.ge.s32.totalorder %s20, 4
      %s27 = sphi 0, %s46
      %s28 = sphi 0, %s42
      %s29 = sphi 0, %s38
      %s30 = sphi 0, %s27
      %s31 = sphi 0, %s28
      %s32 = sphi 0, %s29
      %s33 = sphi 0, %s30
      %s34 = sphi 0, %s31
      %s35 = sphi 0, %s32
      %s49 = sphi 0, %s51
      %s52 = sphi 0, %s49
      %s53 = sphi 0, %s52
      %s69 = sphi 0, %s53
      %s79 = sphi 0, %s81
      %s82 = sphi 0, %s79
      %s83 = sphi 0, %s82
      %s99 = sphi 0, %s83
      %s109 = sphi 0, %s111
      %s112 = sphi 0, %s109
      %s113 = sphi 0, %s112
      %s129 = sphi 0, %s113
      %s139 = sphi 0, %s141
      %s142 = sphi 0, %s139
      %s143 = sphi 0, %s142
      %s159 = sphi 0, %s143
      %s167 = sphi 0, %s169
      %s170 = sphi 0, %s167
      %s171 = sphi 0, %s170
      %s187 = sphi 0, %s171
    $region4: #{tpu_custom_call.1} parent=1 // loop_header_branch
      %23 = sbr.rel (%p21) target = $region8
    $region5: #{tpu_custom_call.1} parent=1 // loop_body
      %s25 = ssub.s32 %s20, 1
      %s26 = ssub.s32 %s20, 2
      %s36 = sadd.s32 1, %s29
      %p37 = scmp.ge.s32.totalorder %s36, 1
      %s38 = scalar_select %p37, 0, %s36
      %s39 = sadd.s32 1, %s28
      %s40 = scalar_select %p37, %s39, %s28
      %p41 = scmp.ge.s32.totalorder %s40, 1
      %s42 = scalar_select %p41, 0, %s40
      %s43 = sadd.s32 1, %s27
      %s44 = scalar_select %p41, %s43, %s27
      %p45 = scmp.ge.s32.totalorder %s44, 2
      %s46 = scalar_select %p45, 0, %s44
      %s47 = ssub.s32 %s27, %s46
      %p48 = scmp.eq.s32.totalorder %s47, 0
      %s50 = sadd.s32 %s49, 1
      %s51 = scalar_select %p48, %s49, %s50
      %p54 = pneg %p48
      %p55 = scmp.eq.s32.totalorder %s20, 1
      %p56 = por %p54, %p55
      %p57 = scmp.ne.s32.totalorder %s49, %s52
      %p58 = scmp.eq.s32.totalorder %s20, 0
      %p59 = por %p57, %p58
      %p60 = scmp.ne.s32.totalorder %s49, %s52
      %p61 = scmp.eq.s32.totalorder %s25, 1
      %p62 = por %p60, %p61
      %p63 = scmp.ne.s32.totalorder %s52, %s53
      %p64 = scmp.eq.s32.totalorder %s25, 0
      %p65 = por %p63, %p64
      %p66 = scmp.ne.s32.totalorder %s52, %s53
      %p67 = scmp.eq.s32.totalorder %s26, 1
      %p68 = por %p66, %p67
      %p70 = scmp.ne.s32.totalorder %s53, %s69
      %p71 = scmp.eq.s32.totalorder %s26, 0
      %p72 = por %p70, %p71
      %s73 = sadd.s32 %s28, %s29
      %s74 = sadd.s32 %s42, %s38
      %s75 = ssub.s32 %s27, %s46
      %s76 = ssub.s32 %s73, %s74
      %s77 = sor.u32 %s75, %s76
      %p78 = scmp.eq.s32.totalorder %s77, 0
      %s80 = sadd.s32 %s79, 1
      %s81 = scalar_select %p78, %s79, %s80
      %p84 = pneg %p78
      %p85 = scmp.eq.s32.totalorder %s20, 1
      %p86 = por %p84, %p85
      %p87 = scmp.ne.s32.totalorder %s79, %s82
      %p88 = scmp.eq.s32.totalorder %s20, 0
      %p89 = por %p87, %p88
      %p90 = scmp.ne.s32.totalorder %s79, %s82
      %p91 = scmp.eq.s32.totalorder %s25, 1
      %p92 = por %p90, %p91
      %p93 = scmp.ne.s32.totalorder %s82, %s83
      %p94 = scmp.eq.s32.totalorder %s25, 0
      %p95 = por %p93, %p94
      %p96 = scmp.ne.s32.totalorder %s82, %s83
      %p97 = scmp.eq.s32.totalorder %s26, 1
      %p98 = por %p96, %p97
      %p100 = scmp.ne.s32.totalorder %s83, %s99
      %p101 = scmp.eq.s32.totalorder %s26, 0
      %p102 = por %p100, %p101
      %s103 = sadd.s32 %s28, %s29
      %s104 = sadd.s32 %s42, %s38
      %s105 = ssub.s32 %s27, %s46
      %s106 = ssub.s32 %s103, %s104
      %s107 = sor.u32 %s105, %s106
      %p108 = scmp.eq.s32.totalorder %s107, 0
      %s110 = sadd.s32 %s109, 1
      %s111 = scalar_select %p108, %s109, %s110
      %p114 = pneg %p108
      %p115 = scmp.eq.s32.totalorder %s20, 1
      %p116 = por %p114, %p115
      %p117 = scmp.ne.s32.totalorder %s109, %s112
      %p118 = scmp.eq.s32.totalorder %s20, 0
      %p119 = por %p117, %p118
      %p120 = scmp.ne.s32.totalorder %s109, %s112
      %p121 = scmp.eq.s32.totalorder %s25, 1
      %p122 = por %p120, %p121
      %p123 = scmp.ne.s32.totalorder %s112, %s113
      %p124 = scmp.eq.s32.totalorder %s25, 0
      %p125 = por %p123, %p124
      %p126 = scmp.ne.s32.totalorder %s112, %s113
      %p127 = scmp.eq.s32.totalorder %s26, 1
      %p128 = por %p126, %p127
      %p130 = scmp.ne.s32.totalorder %s113, %s129
      %p131 = scmp.eq.s32.totalorder %s26, 0
      %p132 = por %p130, %p131
      %s133 = sadd.s32 %s28, %s29
      %s134 = sadd.s32 %s42, %s38
      %s135 = ssub.s32 %s27, %s46
      %s136 = ssub.s32 %s133, %s134
      %s137 = sor.u32 %s135, %s136
      %p138 = scmp.eq.s32.totalorder %s137, 0
      %s140 = sadd.s32 %s139, 1
      %s141 = scalar_select %p138, %s139, %s140
      %p144 = pneg %p138
      %p145 = scmp.eq.s32.totalorder %s20, 1
      %p146 = por %p144, %p145
      %p147 = scmp.ne.s32.totalorder %s139, %s142
      %p148 = scmp.eq.s32.totalorder %s20, 0
      %p149 = por %p147, %p148
      %p150 = scmp.ne.s32.totalorder %s139, %s142
      %p151 = scmp.eq.s32.totalorder %s25, 1
      %p152 = por %p150, %p151
      %p153 = scmp.ne.s32.totalorder %s142, %s143
      %p154 = scmp.eq.s32.totalorder %s25, 0
      %p155 = por %p153, %p154
      %p156 = scmp.ne.s32.totalorder %s142, %s143
      %p157 = scmp.eq.s32.totalorder %s26, 1
      %p158 = por %p156, %p157
      %p160 = scmp.ne.s32.totalorder %s143, %s159
      %p161 = scmp.eq.s32.totalorder %s26, 0
      %p162 = por %p160, %p161
      %s163 = sadd.s32 %s27, %s28
      %s164 = sadd.s32 %s46, %s42
      %s165 = ssub.s32 %s163, %s164
      %p166 = scmp.eq.s32.totalorder %s165, 0
      %s168 = sadd.s32 %s167, 1
      %s169 = scalar_select %p166, %s167, %s168
      %p172 = pneg %p166
      %p173 = scmp.eq.s32.totalorder %s20, 1
      %p174 = por %p172, %p173
      %p175 = scmp.ne.s32.totalorder %s167, %s170
      %p176 = scmp.eq.s32.totalorder %s20, 0
      %p177 = por %p175, %p176
      %p178 = scmp.ne.s32.totalorder %s167, %s170
      %p179 = scmp.eq.s32.totalorder %s25, 1
      %p180 = por %p178, %p179
      %p181 = scmp.ne.s32.totalorder %s170, %s171
      %p182 = scmp.eq.s32.totalorder %s25, 0
      %p183 = por %p181, %p182
      %p184 = scmp.ne.s32.totalorder %s170, %s171
      %p185 = scmp.eq.s32.totalorder %s26, 1
      %p186 = por %p184, %p185
      %p188 = scmp.ne.s32.totalorder %s171, %s187
      %p189 = scmp.eq.s32.totalorder %s26, 0
      %p190 = por %p188, %p189
      %p191 = scmp.le.s32.totalorder 1, %s20
      %p192 = scmp.lt.s32.totalorder %s20, 3
      %p193 = pnand %p191, %p192
      %p194 = pneg %p193
      // Predicated region
      $region9: #{tpu_custom_call.1} parent=5 // pred_check
        _
      $region10: #{tpu_custom_call.1} parent=5 // pred_check_branch
        %196 = sbr.rel (%p193) target = $region12
      $region11: #{tpu_custom_call.1} parent=5 // pred_region
        %s197 = ssub.s32 %s20, 1
      $region12: #{tpu_custom_call.1} parent=5 // pred_fallthru
        _
      %p198 = scmp.lt.s32.totalorder %s20, 2
      // Predicated region
      $region13: #{tpu_custom_call.1} parent=5 // pred_check
        %p199 = pneg %p198
      $region14: #{tpu_custom_call.1} parent=5 // pred_check_branch
        %201 = sbr.rel (%p199) target = $region16
      $region15: #{tpu_custom_call.1} parent=5 // pred_region
        // Predicated region
        $region17: #{tpu_custom_call.1} parent=15 // pred_check
          %p202 = pneg %p59
        $region18: #{tpu_custom_call.1} parent=15 // pred_check_branch
          %204 = sbr.rel (%p202) target = $region20
        $region19: #{tpu_custom_call.1} parent=15 // pred_region
          %p205 = scmp.lt.s32.totalorder %s27, 1
          %s206 = scalar_select %p205, %s27, 1
          %s207 = smul.addr %s206, 8
          %s208 = scalar_lea.vmem %s0, %s207
        $region20: #{tpu_custom_call.1} parent=15 // pred_fallthru
          _
        // Predicated region
        $region21: #{tpu_custom_call.1} parent=15 // pred_check
          %p209 = pneg %p89
        $region22: #{tpu_custom_call.1} parent=15 // pred_check_branch
          %211 = sbr.rel (%p209) target = $region24
        $region23: #{tpu_custom_call.1} parent=15 // pred_region
          %s212 = sand.u32 %s79, 1
          %s213 = scalar_lea.sflag [#allocation4], %s212
          %s214 = sand.u32 %s79, 1
          %s215 = smul.addr %s214, 8
          %s216 = scalar_lea.vmem [#allocation3], %s215
          %s217 = sadd.s32 %s28, %s29
          %219 = vsyncadd %s213, 0
          %s220 = sadd.s32 %s217, %s27
          %s221 = smul.addr %s220, 8
          %s222 = scalar_lea.hbm %s1, %s221
          %s224 = sshll.u32 %s222, 4
          %s225 = int_to_ptr.hbm [resolvable:$true] %s224
          %s226 = sshll.u32 %s216, 4
          %s227 = int_to_ptr.vmem [resolvable:$true] %s226
          %229 = dma.hbm_to_vmem [thread:$0]  %s225, 128, %s227, %s213
        $region24: #{tpu_custom_call.1} parent=15 // pred_fallthru
          _
        // Predicated region
        $region25: #{tpu_custom_call.1} parent=15 // pred_check
          %p230 = pneg %p119
        $region26: #{tpu_custom_call.1} parent=15 // pred_check_branch
          %232 = sbr.rel (%p230) target = $region28
        $region27: #{tpu_custom_call.1} parent=15 // pred_region
          %s233 = sadd.s32 %s28, %s29
          %p234 = scmp.lt.s32.totalorder %s27, 1
          %s235 = scalar_select %p234, %s27, 1
          %p236 = scmp.lt.s32.totalorder %s233, 0
          %s237 = scalar_select %p236, %s233, 0
          %s238 = sadd.s32 %s237, %s235
          %s239 = smul.addr %s238, 8
          %s240 = scalar_lea.vmem %s2, %s239
          %s241 = sadd.s32 %s28, %s29
        $region28: #{tpu_custom_call.1} parent=15 // pred_fallthru
          _
      $region16: #{tpu_custom_call.1} parent=5 // pred_fallthru
        _
      %p242 = scmp.le.s32.totalorder 1, %s20
      %p243 = scmp.lt.s32.totalorder %s20, 3
      %p244 = pnand %p242, %p243
      %p245 = pneg %p244
      // Predicated region
      $region29: #{tpu_custom_call.1} parent=5 // pred_check
        _
      $region30: #{tpu_custom_call.1} parent=5 // pred_check_branch
        %247 = sbr.rel (%p244) target = $region32
      $region31: #{tpu_custom_call.1} parent=5 // pred_region
        %s248 = ssub.s32 %s20, 1
        %s249 = sand.u32 %s82, 1
        %s250 = scalar_lea.sflag [#allocation4], %s249
        %s251 = sand.u32 %s82, 1
        %s252 = smul.addr %s251, 8
        %s253 = scalar_lea.vmem [#allocation3], %s252
        // Predicated region
        $region33: #{tpu_custom_call.1} parent=31 // pred_check
          %p254 = pneg %p95
        $region34: #{tpu_custom_call.1} parent=31 // pred_check_branch
          %256 = sbr.rel (%p254) target = $region36
        $region35: #{tpu_custom_call.1} parent=31 // pred_region
          %258 = dma.done %s250, 128
        $region36: #{tpu_custom_call.1} parent=31 // pred_fallthru
          _
        %p259 = scmp.lt.s32.totalorder %s30, 1
        %s260 = scalar_select %p259, %s30, 1
        %s261 = smul.addr %s260, 8
        %s262 = scalar_lea.vmem %s0, %s261
        %p263 = pneg %p65
        %p264 = pneg %p62
        %s265 = sand.u32 %s82, 1
        %s266 = scalar_lea.sflag [#allocation4], %s265
        %s267 = sand.u32 %s82, 1
        %s268 = smul.addr %s267, 8
        %s269 = scalar_lea.vmem [#allocation3], %s268
        %p270 = pneg %p95
        %p271 = pneg %p92
        %s272 = sadd.s32 %s31, %s32
        %p273 = scmp.lt.s32.totalorder %s30, 1
        %s274 = scalar_select %p273, %s30, 1
        %p275 = scmp.lt.s32.totalorder %s272, 0
        %s276 = scalar_select %p275, %s272, 0
        %s277 = sadd.s32 %s276, %s274
        %s278 = smul.addr %s277, 8
        %s279 = scalar_lea.vmem %s2, %s278
        %p280 = pneg %p125
        %p281 = pneg %p122
        %p282 = pneg %p155
        %p283 = pneg %p152
        %s284 = sand.u32 %s142, 1
        %s285 = scalar_lea.sflag [#allocation5], %s284
        %s286 = sand.u32 %s142, 1
        %s287 = smul.addr %s286, 4
        %s288 = scalar_lea.vmem [#allocation6], %s287
        %p289 = pneg %p183
        %p290 = pneg %p180
        %s291 = sand.u32 %s170, 1
        %s292 = scalar_lea.sflag [#allocation8], %s291
        %s293 = sand.u32 %s170, 1
        %s294 = scalar_lea.vmem [#allocation7], %s293
        %p295 = scmp.lt.s32.totalorder %s30, 1
        %s296 = scalar_select %p295, %s30, 1
        %s297 = smul.addr %s296, 8
        %s298 = scalar_lea.vmem %s0, %s297
        %s299 = sadd.s32 %s31, %s32
        %s300 = sadd.s32 %s31, %s32
        %p301 = scmp.lt.s32.totalorder %s30, 1
        %s302 = scalar_select %p301, %s30, 1
        %p303 = scmp.lt.s32.totalorder %s300, 0
        %s304 = scalar_select %p303, %s300, 0
        %s305 = sadd.s32 %s304, %s302
        %s306 = smul.addr %s305, 8
        %s307 = scalar_lea.vmem %s2, %s306
        %s308 = sadd.s32 %s31, %s32
        %s309 = sadd.s32 %s31, %s32
        %s310 = sadd.s32 %s30, %s31
        %p312 = scmp.eq.s32.totalorder %s32, 0
        // Predicated region
        $region37: #{tpu_custom_call.1} parent=31 // pred_check
          %p313 = pneg %p312
        $region38: #{tpu_custom_call.1} parent=31 // pred_check_branch
          %315 = sbr.rel (%p313) target = $region40
        $region39: #{tpu_custom_call.1} parent=31 // pred_region
          %vm316 = vcmask 8192
          %317 = vst.msk [vmem:[%s294] sm:$0x1] %vm316, 0.0
          %v318 = vld [vmem:[%s298] sm:$0xff]
          %v319 = vmul.f32 %v318, %v318
          %vm320 = vcmask 261120
          %v321 = vsel %vm320, %v319, 0.0
          %322 = vadd.xlane.f32.xlu0 %v321
          %v323 = vpop.xlane.xlu0 %322
          %v324 = vmax.f32 %v323, 1e-24
          %v325 = vrsqrt.pop %v324
          %v326 = vmul.f32 %v325, %v324
          %v327 = vmul.f32 %v326, %v325
          %v328 = vmul.f32 0.5, %v327
          %v329 = vsub.f32 1.5, %v328
          %v330 = vmul.f32 %v325, %v329
          %vm331 = vweird.f32 %v324
          %vm332 = vweird.f32 %v325
          %vm333 = vmor %vm331, %vm332
          %v334 = vsel %vm333, %v325, %v330
          %v335 = vmul.f32 %v334, 10.0
          %v336 = vmul.f32 %v318, %v335
          %337 = vxpose.xlu0.b32.start [1/16] %v336, 128
          %338 = vxpose.xlu0.b32.cont [2/16] 0.0, 128
          %339 = vxpose.xlu0.b32.cont [3/16] 0.0, 128
          %340 = vxpose.xlu0.b32.cont [4/16] 0.0, 128
          %341 = vxpose.xlu0.b32.cont [5/16] 0.0, 128
          %342 = vxpose.xlu0.b32.cont [6/16] 0.0, 128
          %343 = vxpose.xlu0.b32.cont [7/16] 0.0, 128
          %344 = vxpose.xlu0.b32.cont [8/16] 0.0, 128
          %345 = vxpose.xlu0.b32.cont [9/16] 0.0, 128
          %346 = vxpose.xlu0.b32.cont [10/16] 0.0, 128
          %347 = vxpose.xlu0.b32.cont [11/16] 0.0, 128
          %348 = vxpose.xlu0.b32.cont [12/16] 0.0, 128
          %349 = vxpose.xlu0.b32.cont [13/16] 0.0, 128
          %350 = vxpose.xlu0.b32.cont [14/16] 0.0, 128
          %351 = vxpose.xlu0.b32.cont [15/16] 0.0, 128
          %352 = vxpose.xlu0.b32.end [16/16] 0.0, 128
          %v353 = vpop.trf.xlu0
          %v354 = vpop.trf.xlu0
          %v355 = vpop.trf.xlu0
          %v356 = vpop.trf.xlu0
          %v357 = vpop.trf.xlu0
          %v358 = vpop.trf.xlu0
          %v359 = vpop.trf.xlu0
          %v360 = vpop.trf.xlu0
          %v361 = vpop.trf.xlu0
          %v362 = vpop.trf.xlu0
          %v363 = vpop.trf.xlu0
          %v364 = vpop.trf.xlu0
          %v365 = vpop.trf.xlu0
          %v366 = vpop.trf.xlu0
          %v367 = vpop.trf.xlu0
          %v368 = vpop.trf.xlu0
          %v369 = vpack.c.bf16 %v353, %v353
          %v370 = vpack.c.bf16 %v354, %v354
          %v371 = vpack.c.bf16 %v355, %v355
          %v372 = vpack.c.bf16 %v356, %v356
          %vm373 = vcmask 60416
          %374 = vst.msk [vmem:[#allocation2] sm:$0xf] %vm373, %v369
          %375 = vst.msk [vmem:[#allocation2 + $0x4] sm:$0xf] %vm373, %v370
          %376 = vst.msk [vmem:[#allocation2 + $0x8] sm:$0xf] %vm373, %v371
          %377 = vst.msk [vmem:[#allocation2 + $0xc] sm:$0xf] %vm373, %v372
        $region40: #{tpu_custom_call.1} parent=31 // pred_fallthru
          _
        %v378 = vld [vmem:[%s253] sm:$0xff]
        %v379 = vmul.f32 %v378, %v378
        %vm380 = vcmask 261120
        %v381 = vsel %vm380, %v379, 0.0
        %382 = vadd.xlane.f32.xlu0 %v381
        %v383 = vpop.xlane.xlu0 %382
        %v384 = vmax.f32 %v383, 1e-24
        %v385 = vrsqrt.pop %v384
        %v386 = vmul.f32 %v385, %v384
        %v387 = vmul.f32 %v386, %v385
        %v388 = vmul.f32 0.5, %v387
        %v389 = vsub.f32 1.5, %v388
        %v390 = vmul.f32 %v385, %v389
        %vm391 = vweird.f32 %v384
        %vm392 = vweird.f32 %v385
        %vm393 = vmor %vm391, %vm392
        %v394 = vsel %vm393, %v385, %v390
        %v395 = vmul.f32 %v378, %v394
        %v396 = vpack.c.bf16 %v395, %v395
        %v397 = vld [vmem:[#allocation2] sm:$0xf]
        %v398 = vld [vmem:[#allocation2 + $0x4] sm:$0xf]
        %v399 = vld [vmem:[#allocation2 + $0x8] sm:$0xf]
        %v400 = vld [vmem:[#allocation2 + $0xc] sm:$0xf]
        %v405 = vunpack.c.l.b16 %v397
        %v406 = vunpack.c.l.b16 %v398
        %v407 = vunpack.c.l.b16 %v399
        %v408 = vunpack.c.l.b16 %v400
        %v409 = vpack.c.b16 %v406, %v405
        %v410 = vpack.c.b16 %v408, %v407
        %v414 = vsel %vm380, %v396, 0
        %416 = vmatpush.bf16.msra.mxu0 0
        %417 = vmatpush.bf16.msra.mxu0 0
        %418 = vmatpush.bf16.msra.mxu0 0
        %419 = vmatpush.bf16.msra.mxu0 0
        %420 = vmatpush.bf16.msra.mxu0 0
        %421 = vmatpush.bf16.msra.mxu0 0
        %422 = vmatpush.bf16.msra.mxu0 %v410
        %423 = vmatpush.bf16.msra.mxu0 %v409
        %424 = vmatmul.bf16.gmra.mxu0 %v414
        %v425 = vpop.f32.mrf.mxu0
        %v426 = vadd.f32 0.0, %v425
        %v427 = vpop.f32.mrf.mxu0
        %428 = vdwg.mxu0
        %v429 = vpack.c.bf16 %v426, %v426
        %vm430 = vcmask 60416
        %431 = vst.msk [vmem:[%s288] sm:$0xf] %vm430, %v429
        %vm432 = vcmask 64512
        %v433 = vsel %vm432, %v426, -inf
        %434 = vmax.xlane.f32.xlu0 %v433
        %v435 = vpop.xlane.xlu0 %434
        %v436 = vsub.f32 %v426, %v435
        %v437 = vmul.f32 %v436, 1.442695
        %v438 = vpow.pop %v437
        %v439 = vsel %vm432, %v438, 0.0
        %440 = vadd.xlane.f32.xlu0 %v439
        %v441 = vpop.xlane.xlu0 %440
        %v442 = vlog2.pop %v441
        %v443 = vmul.f32 %v442, 0.6931472
        %v444 = vadd.f32 %v435, %v443
        %v445 = vld [vmem:[%s307] sm:$0xff]
        %v446 = vlaneseq
        %v447 = vand.u32 %v446, 127
        %448 = vset.pattern.permute.xlu0 0
        %449 = vperm.xlu0 %448, %v445
        %v450 = vpop.permute.xlu0 %449
        %vm451 = vcmp.eq.s32.totalorder %v447, %v450
        %v452 = vsel %vm451, %v426, 0.0
        %v453 = vsel %vm432, %v452, 0.0
        %454 = vadd.xlane.f32.xlu0 %v453
        %v455 = vpop.xlane.xlu0 %454
        %vm456 = vcmp.ge.s32.totalorder %v445, 0
        %v457 = vsub.f32 %v444, %v455
        %v458 = vsel %vm456, %v457, 0.0
        %vm459 = vcmask 7168
        %v460 = vsel %vm459, %v458, 0.0
        %461 = vadd.xlane.f32.xlu0 %v460
        %v462 = vpop.xlane.xlu0 %461
        %v463 = vrot.slane %v462, 4
        %v464 = vadd.f32 %v462, %v463
        %v465 = vrot.slane %v464, 2
        %v466 = vadd.f32 %v464, %v465
        %v467 = vrot.slane %v466, 1
        %v468 = vadd.f32 %v466, %v467
        %s469 = vtos %v468
        %v470 = vsel %vm456, 1.0, 0.0
        %v471 = vsel %vm459, %v470, 0.0
        %472 = vadd.xlane.f32.xlu0 %v471
        %v473 = vpop.xlane.xlu0 %472
        %v474 = vrot.slane %v473, 4
        %v475 = vadd.f32 %v473, %v474
        %v476 = vrot.slane %v475, 2
        %v477 = vadd.f32 %v475, %v476
        %v478 = vrot.slane %v477, 1
        %v479 = vadd.f32 %v477, %v478
        %s480 = vtos %v479
        %v481 = vld [vmem:[%s294] sm:$0x1]
        %vm482 = vcmp.eq.s32.totalorder %v447, 0
        %v483 = vstv %s469
        %v484 = vstv %s480
        %v485 = vsel %vm482, %v483, %v484
        %v486 = vadd.f32 %v481, %v485
        %vm487 = vcmask 8192
        %488 = vst.msk [vmem:[%s294] sm:$0x1] %vm487, %v486
        %s489 = sand.u32 %s142, 1
        %s490 = scalar_lea.sflag [#allocation5], %s489
        %s491 = sand.u32 %s142, 1
        %s492 = smul.addr %s491, 4
        %s493 = scalar_lea.vmem [#allocation6], %s492
        %s494 = sand.u32 %s170, 1
        %s495 = scalar_lea.sflag [#allocation8], %s494
        %s496 = sand.u32 %s170, 1
        %s497 = scalar_lea.vmem [#allocation7], %s496
        // Predicated region
        $region41: #{tpu_custom_call.1} parent=31 // pred_check
          %p498 = pneg %p152
        $region42: #{tpu_custom_call.1} parent=31 // pred_check_branch
          %500 = sbr.rel (%p498) target = $region44
        $region43: #{tpu_custom_call.1} parent=31 // pred_region
          %s501 = sadd.s32 %s31, %s32
          %503 = vsyncadd %s490, 0
          %s504 = sadd.s32 %s501, %s30
          %s505 = smul.addr %s504, 4
          %s506 = scalar_lea.hbm %s3, %s505
          %s508 = sshll.u32 %s493, 4
          %s509 = int_to_ptr.vmem [resolvable:$true] %s508
          %s510 = sshll.u32 %s506, 4
          %s511 = int_to_ptr.hbm [resolvable:$true] %s510
          %513 = dma.vmem_to_hbm [thread:$0]  %s509, 64, %s511, %s490
        $region44: #{tpu_custom_call.1} parent=31 // pred_fallthru
          _
        // Predicated region
        $region45: #{tpu_custom_call.1} parent=31 // pred_check
          %p514 = pneg %p180
        $region46: #{tpu_custom_call.1} parent=31 // pred_check_branch
          %516 = sbr.rel (%p514) target = $region48
        $region47: #{tpu_custom_call.1} parent=31 // pred_region
          %s517 = sadd.s32 %s30, %s31
          %519 = vsyncadd %s495, 0
          %s520 = scalar_lea.hbm %s4, %s517
          %s522 = sshll.u32 %s497, 4
          %s523 = int_to_ptr.vmem [resolvable:$true] %s522
          %s524 = sshll.u32 %s520, 4
          %s525 = int_to_ptr.hbm [resolvable:$true] %s524
          %527 = dma.vmem_to_hbm [thread:$0]  %s523, 16, %s525, %s495
        $region48: #{tpu_custom_call.1} parent=31 // pred_fallthru
          _
      $region32: #{tpu_custom_call.1} parent=5 // pred_fallthru
        _
      %p528 = scmp.le.s32.totalorder 2, %s20
      // Predicated region
      $region49: #{tpu_custom_call.1} parent=5 // pred_check
        %p529 = pneg %p528
      $region50: #{tpu_custom_call.1} parent=5 // pred_check_branch
        %531 = sbr.rel (%p529) target = $region52
      $region51: #{tpu_custom_call.1} parent=5 // pred_region
        %s532 = ssub.s32 %s20, 2
        // Predicated region
        $region53: #{tpu_custom_call.1} parent=51 // pred_check
          %p533 = pneg %p158
        $region54: #{tpu_custom_call.1} parent=51 // pred_check_branch
          %535 = sbr.rel (%p533) target = $region56
        $region55: #{tpu_custom_call.1} parent=51 // pred_region
          %s536 = sand.u32 %s143, 1
          %s537 = scalar_lea.sflag [#allocation5], %s536
          %s538 = sand.u32 %s143, 1
          %s539 = smul.addr %s538, 4
          %s540 = scalar_lea.vmem [#allocation6], %s539
          %542 = dma.done %s537, 64
        $region56: #{tpu_custom_call.1} parent=51 // pred_fallthru
          _
        // Predicated region
        $region57: #{tpu_custom_call.1} parent=51 // pred_check
          %p543 = pneg %p186
        $region58: #{tpu_custom_call.1} parent=51 // pred_check_branch
          %545 = sbr.rel (%p543) target = $region60
        $region59: #{tpu_custom_call.1} parent=51 // pred_region
          %s546 = sand.u32 %s171, 1
          %s547 = scalar_lea.sflag [#allocation8], %s546
          %s548 = sand.u32 %s171, 1
          %s549 = scalar_lea.vmem [#allocation7], %s548
          %551 = dma.done %s547, 16
        $region60: #{tpu_custom_call.1} parent=51 // pred_fallthru
          _
      $region52: #{tpu_custom_call.1} parent=5 // pred_fallthru
        _
    $region6: #{tpu_custom_call.1} parent=1 // loop_footer
      %s24 = sadd.s32 1, %s20
    $region7: #{tpu_custom_call.1} parent=1 // loop_footer_branch
      %19 = sbr.rel target = $region3
    $region8: #{tpu_custom_call.1} parent=1 // loop_exit
      _
    %552 = vsyncpa [#allocation4], 1
    %s553 = scalar_lea.sflag [#allocation4], 1
    %554 = vsyncpa %s553, 1
    %555 = vsyncpa [#allocation5], 1
    %s556 = scalar_lea.sflag [#allocation5], 1
    %557 = vsyncpa %s556, 1
    %558 = vsyncpa [#allocation8], 1
    %s559 = scalar_lea.sflag [#allocation8], 1
    %560 = vsyncpa %s559, 1

</llo_original>
